<compile_context>
chip_gen: v6e
topology: v6e:2x2x1
jax: 0.10.0
libtpu: 0.0.40
codegen_flags: <defaults>
</compile_context>

<pallas_src>
import jax
import jax.numpy as jnp
from jax.experimental import pallas as pl
from jax.experimental.pallas import tpu as pltpu


def _round_up(x, m):
    return (x + m - 1) // m * m


def _max_tile_m():
    """MXU-friendly M tile: 128 on v5-class chips (4x128^2 MXU), 256 on v6e/v7x."""
    try:
        kind = jax.devices()[0].device_kind.lower()
    except Exception:
        kind = ""
    return 128 if "v5" in kind else 256


def simcc_head_kernel(f_ref, w_ref, b_ref, o_ref):
    """One M-tile of the fused SimCC head.

    f_ref: (tile_m, F)   bf16 activation tile (gridded over M)
    w_ref: (F, N)        bf16 fused [Wx || Wy] weights (resident, Buffered(1))
    b_ref: (1, N)        f32 fused [bx || by] bias      (resident, Buffered(1))
    o_ref: (tile_m, N)   f32 fused [pred_x || pred_y] logits tile
    """
    acc = jnp.dot(f_ref[...], w_ref[...], preferred_element_type=jnp.float32)
    o_ref[...] = (acc + b_ref[...]).astype(o_ref.dtype)


def fuse_simcc_head_params(wx, bx, wy, by):
    """One-time fusion of the two Linear heads (hoisted out of the forward)."""
    w_fused = jnp.concatenate([wx, wy], axis=1).astype(jnp.bfloat16)   # (F, w+h)
    b_fused = jnp.concatenate([bx, by], axis=1).astype(jnp.float32)    # (1, w+h)
    return {
        "w_fused": w_fused,
        "b_fused": b_fused,
        "w_out": int(wx.shape[1]),
        "h_out": int(wy.shape[1]),
    }


def simcc_head(f, w_fused, b_fused, w_out, h_out):
    """Fused SimCC head: pred_x = f @ Wx + bx, pred_y = f @ Wy + by.

    f: (B, J, F) f32.  Returns pred_x (B, J, w_out), pred_y (B, J, h_out), f32.
    """
    B, J, F = f.shape
    M = B * J
    N = w_out + h_out
    assert w_fused.shape == (F, N) and b_fused.shape == (1, N)

    # bf16 activations; bf16 sublane granule is 16, so round M up to 16 only.
    f2 = f.reshape(M, F).astype(jnp.bfloat16)
    tile_m = min(_max_tile_m(), _round_up(max(M, 1), 16))
    M_pad = _round_up(M, tile_m)
    if M_pad != M:
        f2 = jnp.pad(f2, ((0, M_pad - M), (0, 0)))

    grid = (M_pad // tile_m,)

    # VMEM budget: 2x bf16 activation tiles + 1x resident bf16 weight +
    # bias + 2x f32 output tiles, with generous headroom, capped at 64 MiB
    # (v7x physical VMEM) so the same limit is valid on every generation.
    vmem_bytes = (2 * tile_m * F * 2) + (F * N * 2) + (N * 4) + (2 * tile_m * N * 4)
    vmem_limit = int(min(max(2 * vmem_bytes + (1 << 20), 8 << 20), 64 << 20))

    # Advisory cost from the *unpadded* problem and actual (bf16/f32) itemsizes.
    cost = pl.CostEstimate(
        flops=2 * M * F * N,
        transcendentals=0,
        bytes_accessed=M * F * 2 + F * N * 2 + N * 4 + M * N * 4,
    )

    out = pl.pallas_call(
        simcc_head_kernel,
        out_shape=jax.ShapeDtypeStruct((M_pad, N), jnp.float32),
        grid_spec=pltpu.PrefetchScalarGridSpec(
            num_scalar_prefetch=0,
            grid=grid,
            in_specs=[
                # Activations: tiled over M, double-buffered by Pallas.
                pl.BlockSpec((tile_m, F), lambda i: (i, 0)),
                # Fused weights: constant block -> resident, single-buffered.
                pl.BlockSpec((F, N), lambda i: (0, 0),
                             pipeline_mode=pl.Buffered(1)),
                # Fused bias: resident, single-buffered.
                pl.BlockSpec((1, N), lambda i: (0, 0),
                             pipeline_mode=pl.Buffered(1)),
            ],
            out_specs=pl.BlockSpec((tile_m, N), lambda i: (i, 0)),
        ),
        compiler_params=pltpu.CompilerParams(
            dimension_semantics=("parallel",),
            vmem_limit_bytes=vmem_limit,
        ),
        cost_estimate=cost,
    )(f2, w_fused, b_fused)

    pred = out[:M]
    pred_x = pred[:, :w_out].reshape(B, J, w_out)
    pred_y = pred[:, w_out:w_out + h_out].reshape(B, J, h_out)
    return pred_x, pred_y


def fake_hrnet(x, conv_w):
    """Deterministic backbone stand-in.

    x: (B, C, H, W) NCHW -> (B, nJoints, H//4, W//4)
    1x1 conv (channel mixing) followed by 4x4 stride-4 average pooling.
    """
    y = jnp.einsum("bchw,jc->bjhw", x, conv_w)
    B, J, H, W = y.shape
    y = y.reshape(B, J, H // 4, 4, W // 4, 4).mean(axis=(3, 5))
    return y


def simcc_hr_forward(x, conv_w, head_params, n_joints):
    """Full SimCC_hr.forward: backbone (glue) + Pallas SimCC head."""
    f = fake_hrnet(x, conv_w)                      # (B, J, H/4, W/4)
    B = f.shape[0]
    f = f.reshape(B, n_joints, -1)                 # (B, J, F)
    return simcc_head(f, head_params["w_fused"], head_params["b_fused"],
                      head_params["w_out"], head_params["h_out"])


if __name__ == "__main__":
    # Small shapes consistent with the module: input image 16x16, nJoints=4.
    B, C = 2, 3
    H_img, W_img = 16, 16            # -> self.h, self.w
    n_joints = 4
    F_dim = (W_img // 4) * (H_img // 4)   # 16 = flattened backbone spatial dim

    key = jax.random.PRNGKey(0)
    k_x, k_conv, k_wx, k_bx, k_wy, k_by = jax.random.split(key, 6)

    x = jax.random.normal(k_x, (B, C, H_img, W_img), jnp.float32)

    # PyTorch Linear-style uniform init bound 1/sqrt(fan_in).
    bound = 1.0 / (F_dim ** 0.5)
    params = {
        "conv_w": jax.random.normal(k_conv, (n_joints, C), jnp.float32) * 0.1,
        # Stored pre-transposed as (in, out) so the kernel does f @ W.
        "wx": jax.random.uniform(k_wx, (F_dim, W_img), jnp.float32, -bound, bound),
        "bx": jax.random.uniform(k_bx, (1, W_img), jnp.float32, -bound, bound),
        "wy": jax.random.uniform(k_wy, (F_dim, H_img), jnp.float32, -bound, bound),
        "by": jax.random.uniform(k_by, (1, H_img), jnp.float32, -bound, bound),
    }
    # One-time head fusion + bf16 cast (not paid per forward step).
    head_params = fuse_simcc_head_params(params["wx"], params["bx"],
                                         params["wy"], params["by"])

    pred_x, pred_y = simcc_hr_forward(x, params["conv_w"], head_params, n_joints)
    jax.block_until_ready((pred_x, pred_y))

    assert pred_x.shape == (B, n_joints, W_img)
    assert pred_y.shape == (B, n_joints, H_img)

    # Reference 1: bf16-consistent (matches kernel input quantization exactly,
    # f32 accumulation) — tight tolerance.
    f_ref = fake_hrnet(x, params["conv_w"]).reshape(B, n_joints, -1)
    f_bf = f_ref.astype(jnp.bfloat16).astype(jnp.float32)
    wx_bf = params["wx"].astype(jnp.bfloat16).astype(jnp.float32)
    wy_bf = params["wy"].astype(jnp.bfloat16).astype(jnp.float32)
    ref_x = jnp.einsum("bjf,fw->bjw", f_bf, wx_bf,
                       precision=jax.lax.Precision.HIGHEST) + params["bx"][0]
    ref_y = jnp.einsum("bjf,fh->bjh", f_bf, wy_bf,
                       precision=jax.lax.Precision.HIGHEST) + params["by"][0]
    assert jnp.allclose(pred_x, ref_x, atol=2e-4, rtol=2e-4), "pred_x mismatch (bf16 ref)"
    assert jnp.allclose(pred_y, ref_y, atol=2e-4, rtol=2e-4), "pred_y mismatch (bf16 ref)"

    # Reference 2: full-f32 module semantics — looser tolerance for bf16 inputs.
    full_x = jnp.einsum("bjf,fw->bjw", f_ref, params["wx"],
                        precision=jax.lax.Precision.HIGHEST) + params["bx"][0]
    full_y = jnp.einsum("bjf,fh->bjh", f_ref, params["wy"],
                        precision=jax.lax.Precision.HIGHEST) + params["by"][0]
    assert jnp.allclose(pred_x, full_x, atol=5e-3, rtol=5e-3), "pred_x mismatch (f32 ref)"
    assert jnp.allclose(pred_y, full_y, atol=5e-3, rtol=5e-3), "pred_y mismatch (f32 ref)"

    print("KERNEL_OK")
</pallas_src>

<mosaic_0001>
module attributes {stable_mosaic.version = 11 : i64} {
  func.func @simcc_head_kernel(%arg0: i32, %arg1: memref<16x16xbf16, #tpu.memory_space<vmem>>, %arg2: memref<16x32xbf16, #tpu.memory_space<vmem>>, %arg3: memref<1x32xf32, #tpu.memory_space<vmem>>, %arg4: memref<16x32xf32, #tpu.memory_space<vmem>>) attributes {dimension_semantics = [#tpu.dimension_semantics<parallel>], iteration_bounds = array<i64: 1>, scalar_prefetch = 0 : i64, scratch_operands = 0 : i64, tpu.core_type = #tpu.core_type<tc>, window_params = [{transform_indices = @transform_0, window_bounds = array<i64: 16, 16>}, {pipeline_mode = #tpu.pipeline_mode<synchronous>, transform_indices = @transform_1, window_bounds = array<i64: 16, 32>}, {pipeline_mode = #tpu.pipeline_mode<synchronous>, transform_indices = @transform_2, window_bounds = array<i64: 1, 32>}, {transform_indices = @transform_3, window_bounds = array<i64: 16, 32>}]} {
    %c0 = arith.constant 0 : index
    %c0_0 = arith.constant 0 : index
    %0 = vector.load %arg1[%c0, %c0_0] : memref<16x16xbf16, #tpu.memory_space<vmem>>, vector<16x16xbf16>
    %c0_1 = arith.constant 0 : index
    %c0_2 = arith.constant 0 : index
    %1 = vector.load %arg2[%c0_1, %c0_2] : memref<16x32xbf16, #tpu.memory_space<vmem>>, vector<16x32xbf16>
    %cst = arith.constant dense<0.000000e+00> : vector<16x32xf32>
    %2 = tpu.matmul %0, %1, %cst {dimension_numbers = #tpu.dot_dimension_numbers<[1], [0], [0], [1], [0, 0, 1, 1], [], []>} : vector<16x16xbf16>, vector<16x32xbf16>, vector<16x32xf32> -> vector<16x32xf32>
    %c0_3 = arith.constant 0 : index
    %c0_4 = arith.constant 0 : index
    %3 = vector.load %arg3[%c0_3, %c0_4] : memref<1x32xf32, #tpu.memory_space<vmem>>, vector<1x32xf32>
    %4 = vector.broadcast %3 : vector<1x32xf32> to vector<16x32xf32>
    %5 = arith.addf %2, %4 : vector<16x32xf32>
    %c0_5 = arith.constant 0 : index
    %c0_6 = arith.constant 0 : index
    %6 = vector.load %arg4[%c0_5, %c0_6] : memref<16x32xf32, #tpu.memory_space<vmem>>, vector<16x32xf32>
    tpu.vector_store %arg4[%c0_5, %c0_6], %5 {strides = array<i32>} : memref<16x32xf32, #tpu.memory_space<vmem>>, vector<16x32xf32>,
    return
  }
  func.func @transform_0(%arg0: i32) -> (i32, i32) {
    %c0_i32 = arith.constant 0 : i32
    %c0_i32_0 = arith.constant 0 : i32
    return %arg0, %c0_i32 : i32, i32
  }
  func.func @transform_1(%arg0: i32) -> (i32, i32) {
    %c0_i32 = arith.constant 0 : i32
    %c0_i32_0 = arith.constant 0 : i32
    %c0_i32_1 = arith.constant 0 : i32
    return %c0_i32, %c0_i32_0 : i32, i32
  }
  func.func @transform_2(%arg0: i32) -> (i32, i32) {
    %c0_i32 = arith.constant 0 : i32
    %c0_i32_0 = arith.constant 0 : i32
    %c0_i32_1 = arith.constant 0 : i32
    return %c0_i32, %c0_i32_0 : i32, i32
  }
  func.func @transform_3(%arg0: i32) -> (i32, i32) {
    %c0_i32 = arith.constant 0 : i32
    %c0_i32_0 = arith.constant 0 : i32
    return %arg0, %c0_i32 : i32, i32
  }
}

</mosaic_0001>

<llo_original>
// kernel: tpu_custom_call.1
$region0: #{tpu_custom_call.1}
  #allocation0 [shape = 'u32[]', space=smem, size = 0x4, offset = 0x4, fixed_abs, tag = 'smem constant byte address 0x4 - core index']
  #allocation1 [shape = 'u32[144,128]{1,0:T(1,128)}', space=vmem, size = 0x12000, scoped, tag = 'internal scratch']
  %s0 = inlined_call_operand.hbm [shape: bf16[16,16], index: 0, kind: input, shape index: {}]
  %s1 = inlined_call_operand.hbm [shape: bf16[16,32], index: 1, kind: input, shape index: {}]
  %s2 = inlined_call_operand.vmem [shape: f32[1,32], index: 2, kind: input, shape index: {}]
  %s3 = inlined_call_operand.hbm [shape: f32[16,32], index: 3, kind: output, shape index: {}]
  %s4 = sld [smem:[#allocation0]]
  $region30: #{tpu_custom_call.1} parent=0
    _
  %s6 = ssub.s32 1, %s4
  %s7 = scalar_select 0, %s6, %s4
  $region1: #{tpu_custom_call.1} parent=0
    #allocation2 [shape = 'u8[4096]{0}', space=vmem, size = 0x1000, scoped, tag = 'input window, operand 0, single buffered']
    #allocation3 [shape = 's32[1]{0}', space=sflag, size = 0x4, scoped, tag = 'scoped memory for tpu_custom_call.1']
    #allocation4 [shape = 's32[1]{0}', space=sflag, size = 0x4, scoped, tag = 'scoped memory for tpu_custom_call.1']
    #allocation5 [shape = 'u8[4096]{0}', space=vmem, size = 0x1000, scoped, tag = 'input window, operand 1, single buffered']
    #allocation6 [shape = 's32[1]{0}', space=sflag, size = 0x4, scoped, tag = 'scoped memory for tpu_custom_call.1']
    #allocation7 [shape = 'u8[8192]{0}', space=vmem, size = 0x2000, scoped, tag = 'output window, operand 0, single buffered']
    %8 = vsyncpa [#allocation3], 0
    %9 = vsyncpa [#allocation6], 0
    %10 = vsyncpa [#allocation4], 0
    // Predicated region
    $region2: #{tpu_custom_call.1} parent=1 // pred_check
      _
    $region3: #{tpu_custom_call.1} parent=1 // pred_check_branch
      %12 = sbr.rel (0) target = $region5
    $region4: #{tpu_custom_call.1} parent=1 // pred_region
      %s14 = ssub.s32 128, 128
      %15 = vsyncadd [#allocation3], %s14
      %s16 = sshll.u32 [#allocation2], 4
      %s17 = int_to_ptr.vmem [resolvable:$true] %s16
      %22 = dma.hbm_to_vmem [thread:$0]  %s0, 128, %s17, [#allocation3], 64, 64, 4
    $region5: #{tpu_custom_call.1} parent=1 // pred_fallthru
      _
    // Predicated region
    $region6: #{tpu_custom_call.1} parent=1 // pred_check
      _
    $region7: #{tpu_custom_call.1} parent=1 // pred_check_branch
      %24 = sbr.rel (0) target = $region9
    $region8: #{tpu_custom_call.1} parent=1 // pred_region
      %s26 = ssub.s32 128, 128
      %27 = vsyncadd [#allocation6], %s26
      %s28 = sshll.u32 [#allocation5], 4
      %s29 = int_to_ptr.vmem [resolvable:$true] %s28
      %34 = dma.hbm_to_vmem [thread:$0]  %s1, 128, %s29, [#allocation6], 64, 64, 4
    $region9: #{tpu_custom_call.1} parent=1 // pred_fallthru
      _
    // Predicated region
    $region10: #{tpu_custom_call.1} parent=1 // pred_check
      _
    $region11: #{tpu_custom_call.1} parent=1 // pred_check_branch
      %36 = sbr.rel (0) target = $region13
    $region12: #{tpu_custom_call.1} parent=1 // pred_region
      _
    $region13: #{tpu_custom_call.1} parent=1 // pred_fallthru
      _
    // Predicated region
    $region14: #{tpu_custom_call.1} parent=1 // pred_check
      _
    $region15: #{tpu_custom_call.1} parent=1 // pred_check_branch
      %38 = sbr.rel (0) target = $region17
    $region16: #{tpu_custom_call.1} parent=1 // pred_region
      %39 = dma.done [#allocation3], 128
    $region17: #{tpu_custom_call.1} parent=1 // pred_fallthru
      _
    // Predicated region
    $region18: #{tpu_custom_call.1} parent=1 // pred_check
      _
    $region19: #{tpu_custom_call.1} parent=1 // pred_check_branch
      %41 = sbr.rel (0) target = $region21
    $region20: #{tpu_custom_call.1} parent=1 // pred_region
      %42 = dma.done [#allocation6], 128
    $region21: #{tpu_custom_call.1} parent=1 // pred_fallthru
      _
    %v44 = vld [vmem:[#allocation2] sm:$0xf]
    %v45 = vld [vmem:[#allocation2 + $0x4] sm:$0xf]
    %v46 = vld [vmem:[#allocation5] sm:$0xf]
    %v47 = vld [vmem:[#allocation5 + $0x4] sm:$0xf]
    %v48 = vld [vmem:[%s2] sm:$0x1]
    %v50 = vlaneseq
    %v51 = vshrl.u32 %v50, 7
    %v52 = vsub.s32 0, %v51
    %v53 = vrot.slane %v48, %v52
    %v57 = vunpack.c.l.b16 %v44
    %v58 = vunpack.c.l.b16 %v45
    %v59 = vpack.c.b16 %v58, %v57
    %v62 = vunpack.c.l.b16 %v46
    %v63 = vunpack.c.l.b16 %v47
    %v64 = vpack.c.b16 %v63, %v62
    %vm66 = vcmask 130048
    %v68 = vsel %vm66, %v59, 0
    %70 = vmatprep.subr.bf16.mxu0 0
    %71 = vmatpush1.bf16.msra.mxu0 0
    %72 = vmatprep.subr.bf16.mxu0 0
    %73 = vmatpush1.bf16.msra.mxu0 0
    %74 = vmatprep.subr.bf16.mxu0 0
    %75 = vmatpush1.bf16.msra.mxu0 0
    %76 = vmatprep.subr.bf16.mxu0 0
    %77 = vmatpush1.bf16.msra.mxu0 0
    %78 = vmatprep.subr.bf16.mxu0 0
    %79 = vmatpush1.bf16.msra.mxu0 0
    %80 = vmatprep.subr.bf16.mxu0 0
    %81 = vmatpush1.bf16.msra.mxu0 0
    %82 = vmatprep.subr.bf16.mxu0 0
    %83 = vmatpush1.bf16.msra.mxu0 0
    %84 = vmatprep.subr.bf16.mxu0 0
    %85 = vmatpush1.bf16.msra.mxu0 %v64
    %86 = vmatprep.subr.bf16.mxu0 0
    %87 = vmatpush2.bf16.msra.mxu0 0
    %88 = vmatprep.subr.bf16.mxu0 0
    %89 = vmatpush2.bf16.msra.mxu0 0
    %90 = vmatprep.subr.bf16.mxu0 0
    %91 = vmatpush2.bf16.msra.mxu0 0
    %92 = vmatprep.subr.bf16.mxu0 0
    %93 = vmatpush2.bf16.msra.mxu0 0
    %94 = vmatprep.subr.bf16.mxu0 0
    %95 = vmatpush2.bf16.msra.mxu0 0
    %96 = vmatprep.subr.bf16.mxu0 0
    %97 = vmatpush2.bf16.msra.mxu0 0
    %98 = vmatprep.subr.bf16.mxu0 0
    %99 = vmatpush2.bf16.msra.mxu0 0
    %100 = vmatprep.subr.bf16.mxu0 0
    %101 = vmatpush2.bf16.msra.mxu0 0
    %102 = vmatprep.mubr.bf16.mxu0 0
    %103 = vmatmul.mubr.bf16.gmra.mxu0 %v68
    %v104 = vpop.f32.mrf.mxu0
    %v105 = vadd.f32 %v53, %v104
    %v106 = vpop.f32.mrf.mxu0
    %v107 = vpop.f32.mrf.mxu0
    %v108 = vadd.f32 %v53, %v107
    %v109 = vpop.f32.mrf.mxu0
    %110 = vdwg.mxu0
    %vm111 = vcmask 261120
    %112 = vst.msk [vmem:[#allocation7] sm:$0xff] %vm111, %v105
    %113 = vst.msk [vmem:[#allocation7 + $0x8] sm:$0xff] %vm111, %v108
    // Predicated region
    $region22: #{tpu_custom_call.1} parent=1 // pred_check
      _
    $region23: #{tpu_custom_call.1} parent=1 // pred_check_branch
      %115 = sbr.rel (0) target = $region25
    $region24: #{tpu_custom_call.1} parent=1 // pred_region
      %s117 = ssub.s32 256, 256
      %118 = vsyncadd [#allocation4], %s117
      %s119 = sshll.u32 [#allocation7], 4
      %s120 = int_to_ptr.vmem [resolvable:$true] %s119
      %125 = dma.vmem_to_hbm [thread:$0]  %s120, 256, %s3, [#allocation4], 128, 128, 8
    $region25: #{tpu_custom_call.1} parent=1 // pred_fallthru
      _
    // Predicated region
    $region26: #{tpu_custom_call.1} parent=1 // pred_check
      _
    $region27: #{tpu_custom_call.1} parent=1 // pred_check_branch
      %127 = sbr.rel (0) target = $region29
    $region28: #{tpu_custom_call.1} parent=1 // pred_region
      %128 = dma.done [#allocation4], 256
    $region29: #{tpu_custom_call.1} parent=1 // pred_fallthru
      _
    %129 = vsyncpa [#allocation3], 1
    %130 = vsyncpa [#allocation6], 1
    %131 = vsyncpa [#allocation4], 1

</llo_original>
